<compile_context>
chip_gen: v6e
topology: v6e:2x2x1
jax: 0.10.0
libtpu: 0.0.40
codegen_flags: <defaults>
</compile_context>

<pallas_src>
import math
import jax
import jax.numpy as jnp
from jax.experimental import pallas as pl
from jax.experimental.pallas import tpu as pltpu


def _round_up(x, m):
    return pl.cdiv(x, m) * m


# Weight slab (bf16) budget below which we keep the whole (Fp, Hp) weight
# resident in VMEM.  2048 x 2048 x 2B = 8 MiB fits exactly.
_WEIGHT_RESIDENT_MAX_BYTES = 8 * 1024 * 1024


def _linear_hardtanh_kernel(x_ref, w_ref, b_ref, o_ref):
    # x_ref: (tm, Fp) f32 (first layer) or bf16 (later layers)
    # w_ref: (Fp, tn) bf16 | b_ref: (1, tn) f32 | o_ref: (tm, tn) bf16/f32
    x = x_ref[...].astype(jnp.bfloat16)       # no-op if already bf16
    acc = jnp.dot(x, w_ref[...], preferred_element_type=jnp.float32)
    acc = acc + b_ref[...]
    # Hardtanh(min_val=0, max_val=20)
    o_ref[...] = jnp.clip(acc, 0.0, 20.0).astype(o_ref.dtype)


def linear_hardtanh(xp, wp, bp, *, tm, out_dtype=jnp.bfloat16, tn=512):
    """Fused Linear + Hardtanh(0, 20) on pre-padded operands.

    xp: (Mp, Fp) f32 or bf16, Mp % tm == 0, Fp % 128 == 0 (F zero-padded).
    wp: (Fp, Hp) bf16, zero-padded; bp: (1, Hp) f32, zero-padded.
    Returns (Mp, Hp) in `out_dtype`; padded H columns are exactly 0.
    """
    Mp, Fp = xp.shape
    Fp_w, Hp = wp.shape
    assert Fp == Fp_w, "activation width must match padded weight input dim"
    assert Mp % tm == 0 and Fp % 128 == 0 and Hp % 128 == 0

    x_item = jnp.dtype(xp.dtype).itemsize
    o_item = jnp.dtype(out_dtype).itemsize
    w_total_bytes = Fp * Hp * 2

    if w_total_bytes <= _WEIGHT_RESIDENT_MAX_BYTES:
        # Weight-resident path: 1-D grid over rows; weight/bias block index is
        # constant so they are DMA'd exactly once.
        tn_eff = Hp
        grid = (Mp // tm,)
        in_specs = [
            pl.BlockSpec((tm, Fp), lambda i: (i, 0)),
            pl.BlockSpec((Fp, Hp), lambda i: (0, 0)),
            pl.BlockSpec((1, Hp), lambda i: (0, 0)),
        ]
        out_specs = pl.BlockSpec((tm, Hp), lambda i: (i, 0))
        dims = ("parallel",)
        bytes_accessed = (Mp * Fp * x_item          # x streamed once
                          + w_total_bytes           # weight fetched once
                          + Hp * 4                  # bias
                          + Mp * Hp * o_item)       # output writeback
    else:
        # Fallback: tile H.  H axis outermost so each weight slab stays
        # resident while rows sweep underneath it (weight read once total).
        tn_eff = tn
        while Hp % tn_eff:                          # Hp is a multiple of 128
            tn_eff //= 2
        grid = (Hp // tn_eff, Mp // tm)
        in_specs = [
            pl.BlockSpec((tm, Fp), lambda j, i: (i, 0)),
            pl.BlockSpec((Fp, tn_eff), lambda j, i: (0, j)),
            pl.BlockSpec((1, tn_eff), lambda j, i: (0, j)),
        ]
        out_specs = pl.BlockSpec((tm, tn_eff), lambda j, i: (i, j))
        dims = ("parallel", "parallel")
        bytes_accessed = ((Hp // tn_eff) * Mp * Fp * x_item   # x re-read per j
                          + w_total_bytes
                          + Hp * 4
                          + Mp * Hp * o_item)

    # Double-buffered VMEM footprint of the chosen tile plan + headroom.
    vmem_est = (2 * tm * Fp * x_item         # x tile
                + 2 * Fp * tn_eff * 2        # weight block (bf16)
                + 2 * tn_eff * 4             # bias block
                + 2 * tm * tn_eff * o_item)  # output tile
    vmem_limit = int(min(96 << 20, max(32 << 20, vmem_est + (8 << 20))))

    cost = pl.CostEstimate(flops=2 * Mp * Fp * Hp, transcendentals=0,
                           bytes_accessed=int(bytes_accessed))

    return pl.pallas_call(
        _linear_hardtanh_kernel,
        out_shape=jax.ShapeDtypeStruct((Mp, Hp), out_dtype),
        grid_spec=pltpu.PrefetchScalarGridSpec(
            num_scalar_prefetch=0,
            grid=grid,
            in_specs=in_specs,
            out_specs=out_specs,
        ),
        compiler_params=pltpu.CompilerParams(
            dimension_semantics=dims,
            vmem_limit_bytes=vmem_limit,
        ),
        cost_estimate=cost,
    )(xp, wp, bp)


def init_fully_connected_params(key, frequencies, layers_sizes):
    """torch.nn.Linear-style init U(-1/sqrt(in), 1/sqrt(in)); weights stored (in, out)."""
    sizes = list(zip([frequencies] + layers_sizes, layers_sizes))
    params = []
    for inner, outer in sizes:
        key, kw, kb = jax.random.split(key, 3)
        bound = 1.0 / math.sqrt(inner)
        w = jax.random.uniform(kw, (inner, outer), jnp.float32, -bound, bound)
        b = jax.random.uniform(kb, (outer,), jnp.float32, -bound, bound)
        params.append((w, b))
    return params


def prepare_fc_params(params):
    """One-time pad (to 128-aligned dims) + cast of weights to bf16, bias to (1, Hp) f32."""
    prepared = []
    for w, b in params:
        F, H = w.shape
        Fp, Hp = _round_up(F, 128), _round_up(H, 128)
        wp = jnp.pad(w, ((0, Fp - F), (0, Hp - H))).astype(jnp.bfloat16)
        bp = jnp.pad(b, (0, Hp - H)).reshape(1, Hp).astype(jnp.float32)
        prepared.append((wp, bp, H))
    return prepared


def fully_connected_forward(x, prepared_params, *, tm=512):
    """x: (N, T, F) f32 -> (N, T, last_hidden) f32.  dropout=0 (identity)."""
    # TODO(synk): fuse consecutive layers into a single pallas_call (both bf16
    # weight slabs resident, activation tile chained through VMEM) to remove
    # the remaining inter-layer bf16 HBM round trip; budget against v7x 64 MiB.
    N, T, F = x.shape
    M = N * T

    tm_eff = min(tm, _round_up(M, 8))
    Mp = _round_up(M, tm_eff)
    Fp0 = prepared_params[0][0].shape[0]

    h = x.reshape(M, F)
    if Mp != M or Fp0 != F:
        # Single pad for the whole stack; padded rows/cols are zero so they
        # stay zero through every layer and are sliced off at the end.
        h = jnp.pad(h, ((0, Mp - M), (0, Fp0 - F)))

    n_layers = len(prepared_params)
    for l, (wp, bp, _H) in enumerate(prepared_params):
        assert h.shape[1] == wp.shape[0]
        last = (l == n_layers - 1)
        h = linear_hardtanh(h, wp, bp, tm=tm_eff,
                            out_dtype=jnp.float32 if last else jnp.bfloat16)

    H_last = prepared_params[-1][2]
    return h[:M, :H_last].reshape(N, T, H_last)


if __name__ == "__main__":
    key = jax.random.PRNGKey(0)
    kx, kp = jax.random.split(key)

    # --- Test 1: default single-layer config (scaled down) ------------------
    N, T, F = 2, 8, 32            # batch, time steps, frequencies
    layers_sizes = [64]           # stand-in for the default [2048]

    x = jax.random.normal(kx, (N, T, F), dtype=jnp.float32)
    params = init_fully_connected_params(kp, F, layers_sizes)
    prepared = prepare_fc_params(params)

    out = fully_connected_forward(x, prepared)
    out = jax.block_until_ready(out)
    assert out.shape == (N, T, layers_sizes[-1])

    def ref_emulated(x3d, params):
        # Emulate kernel numerics: bf16 operands, f32 accumulate, bf16
        # intermediate activations, f32 final layer.
        h = x3d.reshape(-1, x3d.shape[-1])
        for i, (w, b) in enumerate(params):
            acc = jnp.dot(h.astype(jnp.bfloat16), w.astype(jnp.bfloat16),
                          preferred_element_type=jnp.float32) + b
            h = jnp.clip(acc, 0.0, 20.0)
            if i != len(params) - 1:
                h = h.astype(jnp.bfloat16)
        return h.astype(jnp.float32).reshape(x3d.shape[0], x3d.shape[1], -1)

    def ref_f32(x3d, params):
        h = x3d.reshape(-1, x3d.shape[-1])
        for w, b in params:
            h = jnp.clip(h @ w + b, 0.0, 20.0)
        return h.reshape(x3d.shape[0], x3d.shape[1], -1)

    assert jnp.allclose(out, ref_emulated(x, params), atol=1e-3, rtol=1e-3)
    assert jnp.allclose(out, ref_f32(x, params), atol=2e-2, rtol=2e-2)

    # --- Test 2: two-layer config (exercises bf16 chaining + H padding) -----
    layers_sizes2 = [64, 48]
    params2 = init_fully_connected_params(jax.random.PRNGKey(1), F, layers_sizes2)
    prepared2 = prepare_fc_params(params2)
    out2 = jax.block_until_ready(fully_connected_forward(x, prepared2))
    assert out2.shape == (N, T, layers_sizes2[-1])
    assert jnp.allclose(out2, ref_emulated(x, params2), atol=1e-3, rtol=1e-3)
    assert jnp.allclose(out2, ref_f32(x, params2), atol=2e-2, rtol=2e-2)

    print("KERNEL_OK")
</pallas_src>

<mosaic_0001>
module attributes {stable_mosaic.version = 11 : i64} {
  func.func @_linear_hardtanh_kernel(%arg0: i32, %arg1: memref<16x128xf32, #tpu.memory_space<vmem>>, %arg2: memref<128x128xbf16, #tpu.memory_space<vmem>>, %arg3: memref<1x128xf32, #tpu.memory_space<vmem>>, %arg4: memref<16x128xf32, #tpu.memory_space<vmem>>) attributes {dimension_semantics = [#tpu.dimension_semantics<parallel>], iteration_bounds = array<i64: 1>, scalar_prefetch = 0 : i64, scratch_operands = 0 : i64, tpu.core_type = #tpu.core_type<tc>, window_params = [{transform_indices = @transform_0, window_bounds = array<i64: 16, 128>}, {pipeline_mode = #tpu.pipeline_mode<synchronous>, transform_indices = @transform_1, window_bounds = array<i64: 128, 128>}, {pipeline_mode = #tpu.pipeline_mode<synchronous>, transform_indices = @transform_2, window_bounds = array<i64: 1, 128>}, {transform_indices = @transform_3, window_bounds = array<i64: 16, 128>}]} {
    %c0 = arith.constant 0 : index
    %c0_0 = arith.constant 0 : index
    %0 = vector.load %arg1[%c0, %c0_0] : memref<16x128xf32, #tpu.memory_space<vmem>>, vector<16x128xf32>
    %1 = arith.truncf %0 : vector<16x128xf32> to vector<16x128xbf16>
    %c0_1 = arith.constant 0 : index
    %c0_2 = arith.constant 0 : index
    %2 = vector.load %arg2[%c0_1, %c0_2] : memref<128x128xbf16, #tpu.memory_space<vmem>>, vector<128x128xbf16>
    %cst = arith.constant dense<0.000000e+00> : vector<16x128xf32>
    %3 = tpu.matmul %1, %2, %cst {dimension_numbers = #tpu.dot_dimension_numbers<[1], [0], [0], [1], [0, 0, 1, 1], [], []>} : vector<16x128xbf16>, vector<128x128xbf16>, vector<16x128xf32> -> vector<16x128xf32>
    %c0_3 = arith.constant 0 : index
    %c0_4 = arith.constant 0 : index
    %4 = vector.load %arg3[%c0_3, %c0_4] : memref<1x128xf32, #tpu.memory_space<vmem>>, vector<1x128xf32>
    %5 = vector.broadcast %4 : vector<1x128xf32> to vector<16x128xf32>
    %6 = arith.addf %3, %5 : vector<16x128xf32>
    %cst_5 = arith.constant 0.000000e+00 : f32
    %cst_6 = arith.constant 2.000000e+01 : f32
    %7 = vector.broadcast %cst_5 : f32 to vector<16x128xf32>
    %8 = arith.maximumf %7, %6 : vector<16x128xf32>
    %9 = vector.broadcast %cst_6 : f32 to vector<16x128xf32>
    %10 = arith.minimumf %9, %8 : vector<16x128xf32>
    %c0_7 = arith.constant 0 : index
    %c0_8 = arith.constant 0 : index
    %11 = vector.load %arg4[%c0_7, %c0_8] : memref<16x128xf32, #tpu.memory_space<vmem>>, vector<16x128xf32>
    tpu.vector_store %arg4[%c0_7, %c0_8], %10 {strides = array<i32>} : memref<16x128xf32, #tpu.memory_space<vmem>>, vector<16x128xf32>,
    return
  }
  func.func @transform_0(%arg0: i32) -> (i32, i32) {
    %c0_i32 = arith.constant 0 : i32
    %c0_i32_0 = arith.constant 0 : i32
    return %arg0, %c0_i32 : i32, i32
  }
  func.func @transform_1(%arg0: i32) -> (i32, i32) {
    %c0_i32 = arith.constant 0 : i32
    %c0_i32_0 = arith.constant 0 : i32
    %c0_i32_1 = arith.constant 0 : i32
    return %c0_i32, %c0_i32_0 : i32, i32
  }
  func.func @transform_2(%arg0: i32) -> (i32, i32) {
    %c0_i32 = arith.constant 0 : i32
    %c0_i32_0 = arith.constant 0 : i32
    %c0_i32_1 = arith.constant 0 : i32
    return %c0_i32, %c0_i32_0 : i32, i32
  }
  func.func @transform_3(%arg0: i32) -> (i32, i32) {
    %c0_i32 = arith.constant 0 : i32
    %c0_i32_0 = arith.constant 0 : i32
    return %arg0, %c0_i32 : i32, i32
  }
}

</mosaic_0001>

<llo_original>
// kernel: tpu_custom_call.1
$region0: #{tpu_custom_call.1}
  #allocation0 [shape = 'u32[]', space=smem, size = 0x4, offset = 0x4, fixed_abs, tag = 'smem constant byte address 0x4 - core index']
  #allocation1 [shape = 'u32[144,128]{1,0:T(1,128)}', space=vmem, size = 0x12000, scoped, tag = 'internal scratch']
  %s0 = inlined_call_operand.hbm [shape: f32[16,128], index: 0, kind: input, shape index: {}]
  %s1 = inlined_call_operand.hbm [shape: bf16[128,128], index: 1, kind: input, shape index: {}]
  %s2 = inlined_call_operand.vmem [shape: f32[1,128], index: 2, kind: input, shape index: {}]
  %s3 = inlined_call_operand.hbm [shape: f32[16,128], index: 3, kind: output, shape index: {}]
  %s4 = sld [smem:[#allocation0]]
  $region30: #{tpu_custom_call.1} parent=0
    _
  %s6 = ssub.s32 1, %s4
  %s7 = scalar_select 0, %s6, %s4
  $region1: #{tpu_custom_call.1} parent=0
    #allocation2 [shape = 'u8[8192]{0}', space=vmem, size = 0x2000, scoped, tag = 'input window, operand 0, single buffered']
    #allocation3 [shape = 's32[1]{0}', space=sflag, size = 0x4, scoped, tag = 'scoped memory for tpu_custom_call.1']
    #allocation4 [shape = 's32[1]{0}', space=sflag, size = 0x4, scoped, tag = 'scoped memory for tpu_custom_call.1']
    #allocation5 [shape = 'u8[32768]{0}', space=vmem, size = 0x8000, scoped, tag = 'input window, operand 1, single buffered']
    #allocation6 [shape = 's32[1]{0}', space=sflag, size = 0x4, scoped, tag = 'scoped memory for tpu_custom_call.1']
    #allocation7 [shape = 'u8[8192]{0}', space=vmem, size = 0x2000, scoped, tag = 'output window, operand 0, single buffered']
    %8 = vsyncpa [#allocation3], 0
    %9 = vsyncpa [#allocation6], 0
    %10 = vsyncpa [#allocation4], 0
    // Predicated region
    $region2: #{tpu_custom_call.1} parent=1 // pred_check
      _
    $region3: #{tpu_custom_call.1} parent=1 // pred_check_branch
      %12 = sbr.rel (0) target = $region5
    $region4: #{tpu_custom_call.1} parent=1 // pred_region
      %s14 = ssub.s32 256, 256
      %15 = vsyncadd [#allocation3], %s14
      %s16 = sshll.u32 [#allocation2], 4
      %s17 = int_to_ptr.vmem [resolvable:$true] %s16
      %22 = dma.hbm_to_vmem [thread:$0]  %s0, 256, %s17, [#allocation3], 128, 128, 8
    $region5: #{tpu_custom_call.1} parent=1 // pred_fallthru
      _
    // Predicated region
    $region6: #{tpu_custom_call.1} parent=1 // pred_check
      _
    $region7: #{tpu_custom_call.1} parent=1 // pred_check_branch
      %24 = sbr.rel (0) target = $region9
    $region8: #{tpu_custom_call.1} parent=1 // pred_region
      %s26 = ssub.s32 1024, 1024
      %27 = vsyncadd [#allocation6], %s26
      %s28 = sshll.u32 [#allocation5], 4
      %s29 = int_to_ptr.vmem [resolvable:$true] %s28
      %34 = dma.hbm_to_vmem [thread:$0]  %s1, 1024, %s29, [#allocation6], 64, 64, 4
    $region9: #{tpu_custom_call.1} parent=1 // pred_fallthru
      _
    // Predicated region
    $region10: #{tpu_custom_call.1} parent=1 // pred_check
      _
    $region11: #{tpu_custom_call.1} parent=1 // pred_check_branch
      %36 = sbr.rel (0) target = $region13
    $region12: #{tpu_custom_call.1} parent=1 // pred_region
      _
    $region13: #{tpu_custom_call.1} parent=1 // pred_fallthru
      _
    // Predicated region
    $region14: #{tpu_custom_call.1} parent=1 // pred_check
      _
    $region15: #{tpu_custom_call.1} parent=1 // pred_check_branch
      %38 = sbr.rel (0) target = $region17
    $region16: #{tpu_custom_call.1} parent=1 // pred_region
      %39 = dma.done [#allocation3], 256
    $region17: #{tpu_custom_call.1} parent=1 // pred_fallthru
      _
    // Predicated region
    $region18: #{tpu_custom_call.1} parent=1 // pred_check
      _
    $region19: #{tpu_custom_call.1} parent=1 // pred_check_branch
      %41 = sbr.rel (0) target = $region21
    $region20: #{tpu_custom_call.1} parent=1 // pred_region
      %42 = dma.done [#allocation6], 1024
    $region21: #{tpu_custom_call.1} parent=1 // pred_fallthru
      _
    %v44 = vld [vmem:[#allocation2] sm:$0xff]
    %v45 = vld [vmem:[#allocation2 + $0x8] sm:$0xff]
    %v46 = vpack.c.bf16 %v45, %v44
    %v47 = vld [vmem:[#allocation5] sm:$0xf]
    %v48 = vld [vmem:[#allocation5 + $0x4] sm:$0xf]
    %v49 = vld [vmem:[#allocation5 + $0x8] sm:$0xf]
    %v50 = vld [vmem:[#allocation5 + $0xc] sm:$0xf]
    %v51 = vld [vmem:[#allocation5 + $0x10] sm:$0xf]
    %v52 = vld [vmem:[#allocation5 + $0x14] sm:$0xf]
    %v53 = vld [vmem:[#allocation5 + $0x18] sm:$0xf]
    %v54 = vld [vmem:[#allocation5 + $0x1c] sm:$0xf]
    %v55 = vld [vmem:[#allocation5 + $0x20] sm:$0xf]
    %v56 = vld [vmem:[#allocation5 + $0x24] sm:$0xf]
    %v57 = vld [vmem:[#allocation5 + $0x28] sm:$0xf]
    %v58 = vld [vmem:[#allocation5 + $0x2c] sm:$0xf]
    %v59 = vld [vmem:[#allocation5 + $0x30] sm:$0xf]
    %v60 = vld [vmem:[#allocation5 + $0x34] sm:$0xf]
    %v61 = vld [vmem:[#allocation5 + $0x38] sm:$0xf]
    %v62 = vld [vmem:[#allocation5 + $0x3c] sm:$0xf]
    %v63 = vld [vmem:[%s2] sm:$0x1]
    %v65 = vlaneseq
    %v66 = vshrl.u32 %v65, 7
    %v67 = vsub.s32 0, %v66
    %v68 = vrot.slane %v63, %v67
    %v86 = vunpack.c.l.b16 %v47
    %v87 = vunpack.c.l.b16 %v48
    %v88 = vunpack.c.l.b16 %v49
    %v89 = vunpack.c.l.b16 %v50
    %v90 = vunpack.c.l.b16 %v51
    %v91 = vunpack.c.l.b16 %v52
    %v92 = vunpack.c.l.b16 %v53
    %v93 = vunpack.c.l.b16 %v54
    %v94 = vunpack.c.l.b16 %v55
    %v95 = vunpack.c.l.b16 %v56
    %v96 = vunpack.c.l.b16 %v57
    %v97 = vunpack.c.l.b16 %v58
    %v98 = vunpack.c.l.b16 %v59
    %v99 = vunpack.c.l.b16 %v60
    %v100 = vunpack.c.l.b16 %v61
    %v101 = vunpack.c.l.b16 %v62
    %v102 = vpack.c.b16 %v87, %v86
    %v103 = vpack.c.b16 %v89, %v88
    %v104 = vpack.c.b16 %v91, %v90
    %v105 = vpack.c.b16 %v93, %v92
    %v106 = vpack.c.b16 %v95, %v94
    %v107 = vpack.c.b16 %v97, %v96
    %v108 = vpack.c.b16 %v99, %v98
    %v109 = vpack.c.b16 %v101, %v100
    %118 = vmatprep.subr.bf16.mxu0 0
    %119 = vmatpush1.bf16.msra.mxu0 %v109
    %120 = vmatprep.subr.bf16.mxu0 0
    %121 = vmatpush1.bf16.msra.mxu0 %v108
    %122 = vmatprep.subr.bf16.mxu0 0
    %123 = vmatpush1.bf16.msra.mxu0 %v107
    %124 = vmatprep.subr.bf16.mxu0 0
    %125 = vmatpush1.bf16.msra.mxu0 %v106
    %126 = vmatprep.subr.bf16.mxu0 0
    %127 = vmatpush1.bf16.msra.mxu0 %v105
    %128 = vmatprep.subr.bf16.mxu0 0
    %129 = vmatpush1.bf16.msra.mxu0 %v104
    %130 = vmatprep.subr.bf16.mxu0 0
    %131 = vmatpush1.bf16.msra.mxu0 %v103
    %132 = vmatprep.subr.bf16.mxu0 0
    %133 = vmatpush1.bf16.msra.mxu0 %v102
    %134 = vmatprep.subr.bf16.mxu0 0
    %135 = vmatpush2.bf16.msra.mxu0 0
    %136 = vmatprep.subr.bf16.mxu0 0
    %137 = vmatpush2.bf16.msra.mxu0 0
    %138 = vmatprep.subr.bf16.mxu0 0
    %139 = vmatpush2.bf16.msra.mxu0 0
    %140 = vmatprep.subr.bf16.mxu0 0
    %141 = vmatpush2.bf16.msra.mxu0 0
    %142 = vmatprep.subr.bf16.mxu0 0
    %143 = vmatpush2.bf16.msra.mxu0 0
    %144 = vmatprep.subr.bf16.mxu0 0
    %145 = vmatpush2.bf16.msra.mxu0 0
    %146 = vmatprep.subr.bf16.mxu0 0
    %147 = vmatpush2.bf16.msra.mxu0 0
    %148 = vmatprep.subr.bf16.mxu0 0
    %149 = vmatpush2.bf16.msra.mxu0 0
    %150 = vmatprep.mubr.bf16.mxu0 0
    %151 = vmatmul.mubr.bf16.gmra.mxu0 %v46
    %v152 = vpop.f32.mrf.mxu0
    %v153 = vadd.f32 %v68, %v152
    %v154 = vpop.f32.mrf.mxu0
    %v155 = vpop.f32.mrf.mxu0
    %v156 = vadd.f32 %v68, %v155
    %v157 = vpop.f32.mrf.mxu0
    %158 = vdwg.mxu0
    %v159 = vmax.f32 %v153, 0.0
    %v160 = vmax.f32 %v156, 0.0
    %v161 = vmin.f32 %v159, 20.0
    %v162 = vmin.f32 %v160, 20.0
    %163 = vst [vmem:[#allocation7] sm:$0xff] %v161
    %164 = vst [vmem:[#allocation7 + $0x8] sm:$0xff] %v162
    // Predicated region
    $region22: #{tpu_custom_call.1} parent=1 // pred_check
      _
    $region23: #{tpu_custom_call.1} parent=1 // pred_check_branch
      %166 = sbr.rel (0) target = $region25
    $region24: #{tpu_custom_call.1} parent=1 // pred_region
      %s168 = ssub.s32 256, 256
      %169 = vsyncadd [#allocation4], %s168
      %s170 = sshll.u32 [#allocation7], 4
      %s171 = int_to_ptr.vmem [resolvable:$true] %s170
      %176 = dma.vmem_to_hbm [thread:$0]  %s171, 256, %s3, [#allocation4], 128, 128, 8
    $region25: #{tpu_custom_call.1} parent=1 // pred_fallthru
      _
    // Predicated region
    $region26: #{tpu_custom_call.1} parent=1 // pred_check
      _
    $region27: #{tpu_custom_call.1} parent=1 // pred_check_branch
      %178 = sbr.rel (0) target = $region29
    $region28: #{tpu_custom_call.1} parent=1 // pred_region
      %179 = dma.done [#allocation4], 256
    $region29: #{tpu_custom_call.1} parent=1 // pred_fallthru
      _
    %180 = vsyncpa [#allocation3], 1
    %181 = vsyncpa [#allocation6], 1
    %182 = vsyncpa [#allocation4], 1

</llo_original>
